<compile_context>
chip_gen: v7x
topology: tpu7x:2x2x1
jax: 0.10.0
libtpu: 0.0.40
codegen_flags: <defaults>
</compile_context>

<pallas_src>
import jax
import jax.numpy as jnp
from jax.experimental import pallas as pl
from jax.experimental.pallas import tpu as pltpu


# --------------------------------------------------------------------------
# Packed-parameter layout (static, sublane-aligned row offsets, 128 lanes)
# --------------------------------------------------------------------------
#   params slab (88, 128) f32:
#     rows  0:4   cols 0:32  -> conv1 W   (4, 32)
#     rows  8:40  cols 0:16  -> conv2 W   (32, 16)
#     rows 40:56  cols 0:8   -> conv3 W   (16, 8)
#     rows 56:64  cols 0:8   -> mlp  W1a  (8, 8)   (rows 0:8  of Linear(16,8))
#     rows 64:72  cols 0:8   -> mlp  W1b  (8, 8)   (rows 8:16 of Linear(16,8))
#     rows 72:80  cols 0:128 -> mlp  W2   (8, 2) zero-padded to 128 lanes
#     row  80     cols 0:32  -> conv1 b ; row 81 cols 0:16 -> conv2 b
#     row  82     cols 0:8   -> conv3 b ; row 83 cols 0:8  -> mlp b1
#     row  84     cols 0:128 -> mlp b2 zero-padded to 128 lanes


def bgnn_fused_kernel(a_ref, x_ref, pa_ref, p_ref, out_ref):
    """Block-diag-batched 3-layer GCN + folded mean pool + 2-layer MLP."""
    a = a_ref[...]                                                # (Np, Np)
    w = p_ref

    # ---- conv1: A_hat @ (X @ W1) + b1, ReLU ------------------------------
    h = jnp.dot(x_ref[...], w[0:4, 0:32], preferred_element_type=jnp.float32)
    h = jnp.dot(a, h, preferred_element_type=jnp.float32) + w[80:81, 0:32]
    h = jnp.maximum(h, 0.0)

    # ---- conv2 -----------------------------------------------------------
    h = jnp.dot(h, w[8:40, 0:16], preferred_element_type=jnp.float32)
    h = jnp.dot(a, h, preferred_element_type=jnp.float32) + w[81:82, 0:16]
    h = jnp.maximum(h, 0.0)

    # ---- conv3 + global mean pool, with A folded into PA ------------------
    #   P @ (A @ (h @ W3) + b3)  ==  (P @ A) @ (h @ W3) + b3
    g = jnp.dot(h, w[40:56, 0:8], preferred_element_type=jnp.float32)   # (Np, 8)
    hp = (jnp.dot(pa_ref[...], g, preferred_element_type=jnp.float32)
          + w[82:83, 0:8])                                              # (16, 8)
    h0 = hp[0:8, :]                                                     # branch 0
    h1 = hp[8:16, :]                                                    # branch 1

    # ---- MLP head; split-W1 form avoids the concat -----------------------
    # F.dropout(p=0.5, training=False) is identity in eval mode.
    z = (jnp.dot(h0, w[56:64, 0:8], preferred_element_type=jnp.float32)
         + jnp.dot(h1, w[64:72, 0:8], preferred_element_type=jnp.float32)
         + w[83:84, 0:8])
    z = jnp.maximum(z, 0.0)

    # Final Linear(8,2) against a 128-lane zero-padded weight: full-vreg store.
    out_ref[...] = (jnp.dot(z, w[72:80, :], preferred_element_type=jnp.float32)
                    + w[84:85, :])                                      # (8, 128)


# --------------------------------------------------------------------------
# Wrapper: one pallas_call, whole-array VMEM blocks, grid=()
# --------------------------------------------------------------------------
def _vmem_specs(n):
    return [pl.BlockSpec(memory_space=pltpu.MemorySpace.VMEM) for _ in range(n)]


@jax.jit
def bgnn_forward(a_blk, x_blk, pa, params):
    return pl.pallas_call(
        bgnn_fused_kernel,
        out_shape=jax.ShapeDtypeStruct((8, 128), jnp.float32),
        in_specs=_vmem_specs(4),
        out_specs=pl.BlockSpec(memory_space=pltpu.MemorySpace.VMEM),
    )(a_blk, x_blk, pa, params)


# --------------------------------------------------------------------------
# Graph preprocessing (plain-JAX glue, done once outside the kernel)
# --------------------------------------------------------------------------
def build_norm_adj(edge_index, num_nodes):
    """Dense A_hat = D^{-1/2} (A + I) D^{-1/2}, PyG gcn_norm semantics."""
    src, dst = edge_index[0], edge_index[1]
    a = jnp.zeros((num_nodes, num_nodes), jnp.float32)
    a = a.at[dst, src].add(1.0)                      # message flows src -> dst
    a = a + jnp.eye(num_nodes, dtype=jnp.float32)    # self loops
    deg = jnp.sum(a, axis=1)
    dinv = jnp.where(deg > 0, 1.0 / jnp.sqrt(deg), 0.0)
    return a * dinv[:, None] * dinv[None, :]


def build_pool(batch, num_graphs):
    """(G, N) matrix with P[g, i] = 1/|graph g| if batch[i] == g."""
    onehot = (batch[None, :] == jnp.arange(num_graphs)[:, None]).astype(jnp.float32)
    counts = jnp.sum(onehot, axis=1, keepdims=True)
    return onehot / jnp.maximum(counts, 1.0)


def block_diag_batch(x0, a0, pool0, x1, a1, pool1):
    """Stack the two graph batches into one block-diagonal, sublane-padded
    problem and fold A_hat into the (stacked) pooling matrices."""
    n0, n1 = x0.shape[0], x1.shape[0]
    f = x0.shape[1]
    G = pool0.shape[0]
    assert G <= 8, "pool slab layout assumes num_graphs <= 8"
    ntot = n0 + n1
    npad = ((ntot + 7) // 8) * 8                     # sublane-align Ntot

    x = jnp.zeros((npad, f), jnp.float32)
    x = x.at[:n0].set(x0)
    x = x.at[n0:ntot].set(x1)

    a = jnp.zeros((npad, npad), jnp.float32)
    a = a.at[:n0, :n0].set(a0)
    a = a.at[n0:ntot, n0:ntot].set(a1)               # padded rows/cols inert

    p0 = jnp.zeros((G, npad), jnp.float32).at[:, :n0].set(pool0)
    p1 = jnp.zeros((G, npad), jnp.float32).at[:, n0:ntot].set(pool1)

    # Fold A into the pools (graph-structure-only, one-time), stack into one
    # (16, npad) slab: branch 0 at rows 0:G, branch 1 at rows 8:8+G.
    pa = jnp.zeros((16, npad), jnp.float32)
    pa = pa.at[0:G].set(p0 @ a)
    pa = pa.at[8:8 + G].set(p1 @ a)
    return a, x, pa


def pack_params(gcn_params, mlp_params):
    """Pack all weights / biases into one lane-padded (88, 128) VMEM slab."""
    w1, b1, w2, b2, w3, b3 = gcn_params
    mw1, mb1, mw2, mb2 = mlp_params
    p = jnp.zeros((88, 128), jnp.float32)
    p = p.at[0:4, 0:32].set(w1)
    p = p.at[8:40, 0:16].set(w2)
    p = p.at[40:56, 0:8].set(w3)
    p = p.at[56:64, 0:8].set(mw1[:8, :])             # W1a
    p = p.at[64:72, 0:8].set(mw1[8:, :])             # W1b
    p = p.at[72:80, 0:2].set(mw2)                    # zero-padded to 128 lanes
    p = p.at[80, 0:32].set(b1.reshape(-1))
    p = p.at[81, 0:16].set(b2.reshape(-1))
    p = p.at[82, 0:8].set(b3.reshape(-1))
    p = p.at[83, 0:8].set(mb1.reshape(-1))
    p = p.at[84, 0:2].set(mb2.reshape(-1))
    return p


def undirected_ring_edges(offset, n):
    src, dst = [], []
    for i in range(n):
        j = (i + 1) % n
        src += [offset + i, offset + j]
        dst += [offset + j, offset + i]
    return src, dst


# --------------------------------------------------------------------------
# Deterministic parameter init (synthetic; matches __init__ shapes)
# --------------------------------------------------------------------------
def init_params(num_node_features):
    key = jax.random.PRNGKey(12345)
    ks = jax.random.split(key, 10)

    def glorot(k, shape):
        fan_in, fan_out = shape
        scale = jnp.sqrt(6.0 / (fan_in + fan_out))
        return jax.random.uniform(k, shape, jnp.float32, -scale, scale)

    gcn_params = (
        glorot(ks[0], (num_node_features, 32)), jnp.zeros((1, 32), jnp.float32),
        glorot(ks[1], (32, 16)),                jnp.zeros((1, 16), jnp.float32),
        glorot(ks[2], (16, 8)),                 jnp.zeros((1, 8), jnp.float32),
    )
    mlp_params = (
        glorot(ks[3], (16, 8)),
        jax.random.uniform(ks[4], (1, 8), jnp.float32, -0.1, 0.1),
        glorot(ks[5], (8, 2)),
        jax.random.uniform(ks[6], (1, 2), jnp.float32, -0.1, 0.1),
    )
    return gcn_params, mlp_params


# --------------------------------------------------------------------------
# Pure-JAX reference (un-fused, per-branch) for a correctness check
# --------------------------------------------------------------------------
def reference_forward(x0, a0, x1, a1, pool0, pool1, gcn_params, mlp_params):
    w1, b1, w2, b2, w3, b3 = gcn_params
    mw1, mb1, mw2, mb2 = mlp_params

    def gcn(x, a):
        h = jnp.maximum(a @ (x @ w1) + b1, 0.0)
        h = jnp.maximum(a @ (h @ w2) + b2, 0.0)
        return a @ (h @ w3) + b3

    h0 = pool0 @ gcn(x0, a0)
    h1 = pool1 @ gcn(x1, a1)
    h = jnp.concatenate([h0, h1], axis=1)
    h = jnp.maximum(h @ mw1 + mb1, 0.0)
    return h @ mw2 + mb2


# --------------------------------------------------------------------------
if __name__ == "__main__":
    num_node_features = 4
    key = jax.random.PRNGKey(0)
    k0, k1 = jax.random.split(key)

    # Graph batch 0: two ring graphs of 6 nodes each (12 nodes total).
    n0 = 12
    x0 = jax.random.normal(k0, (n0, num_node_features), jnp.float32)
    s_a, d_a = undirected_ring_edges(0, 6)
    s_b, d_b = undirected_ring_edges(6, 6)
    edge_index0 = jnp.array([s_a + s_b, d_a + d_b], dtype=jnp.int32)
    batch0 = jnp.array([0] * 6 + [1] * 6, dtype=jnp.int32)

    # Graph batch 1: two ring graphs of 5 nodes each (10 nodes total).
    n1 = 10
    x1 = jax.random.normal(k1, (n1, num_node_features), jnp.float32)
    s_c, d_c = undirected_ring_edges(0, 5)
    s_d, d_d = undirected_ring_edges(5, 5)
    edge_index1 = jnp.array([s_c + s_d, d_c + d_d], dtype=jnp.int32)
    batch1 = jnp.array([0] * 5 + [1] * 5, dtype=jnp.int32)

    num_graphs = 2
    a_hat0 = build_norm_adj(edge_index0, n0)
    a_hat1 = build_norm_adj(edge_index1, n1)
    pool0 = build_pool(batch0, num_graphs)
    pool1 = build_pool(batch1, num_graphs)

    gcn_params, mlp_params = init_params(num_node_features)

    # One-time preprocessing: block-diag batching + A-fold + parameter packing.
    a_blk, x_blk, pa = block_diag_batch(x0, a_hat0, pool0, x1, a_hat1, pool1)
    params = pack_params(gcn_params, mlp_params)

    out_full = bgnn_forward(a_blk, x_blk, pa, params)
    out_full = jax.block_until_ready(out_full)
    out = out_full[:num_graphs, :2]                                # (G, 2) logits
    assert out.shape == (num_graphs, 2) and out.dtype == jnp.float32

    ref = reference_forward(x0, a_hat0, x1, a_hat1, pool0, pool1,
                            gcn_params, mlp_params)
    assert jnp.allclose(out, ref, rtol=1e-4, atol=1e-4)

    print("KERNEL_OK")
</pallas_src>

<mosaic_0001>
module attributes {stable_mosaic.version = 11 : i64} {
  func.func @bgnn_fused_kernel(%arg0: memref<24x24xf32, #tpu.memory_space<vmem>>, %arg1: memref<24x4xf32, #tpu.memory_space<vmem>>, %arg2: memref<16x24xf32, #tpu.memory_space<vmem>>, %arg3: memref<88x128xf32, #tpu.memory_space<vmem>>, %arg4: memref<8x128xf32, #tpu.memory_space<vmem>>) attributes {dimension_semantics = [], scalar_prefetch = 0 : i64, scratch_operands = 0 : i64, tpu.core_type = #tpu.core_type<tc>} {
    %c0 = arith.constant 0 : index
    %c0_0 = arith.constant 0 : index
    %0 = vector.load %arg0[%c0, %c0_0] : memref<24x24xf32, #tpu.memory_space<vmem>>, vector<24x24xf32>
    %c0_1 = arith.constant 0 : index
    %c0_2 = arith.constant 0 : index
    %1 = vector.load %arg1[%c0_1, %c0_2] : memref<24x4xf32, #tpu.memory_space<vmem>>, vector<24x4xf32>
    %c0_3 = arith.constant 0 : index
    %c0_4 = arith.constant 0 : index
    %2 = vector.load %arg3[%c0_3, %c0_4] : memref<88x128xf32, #tpu.memory_space<vmem>>, vector<4x32xf32>
    %cst = arith.constant dense<0.000000e+00> : vector<24x32xf32>
    %3 = tpu.matmul %1, %2, %cst {dimension_numbers = #tpu.dot_dimension_numbers<[1], [0], [0], [1], [0, 0, 1, 1], [], []>} : vector<24x4xf32>, vector<4x32xf32>, vector<24x32xf32> -> vector<24x32xf32>
    %cst_5 = arith.constant dense<0.000000e+00> : vector<24x32xf32>
    %4 = tpu.matmul %0, %3, %cst_5 {dimension_numbers = #tpu.dot_dimension_numbers<[1], [0], [0], [1], [0, 0, 1, 1], [], []>} : vector<24x24xf32>, vector<24x32xf32>, vector<24x32xf32> -> vector<24x32xf32>
    %c80 = arith.constant 80 : index
    %c0_6 = arith.constant 0 : index
    %5 = vector.load %arg3[%c80, %c0_6] : memref<88x128xf32, #tpu.memory_space<vmem>>, vector<1x32xf32>
    %6 = vector.broadcast %5 : vector<1x32xf32> to vector<24x32xf32>
    %7 = arith.addf %4, %6 : vector<24x32xf32>
    %cst_7 = arith.constant 0.000000e+00 : f32
    %8 = vector.broadcast %cst_7 : f32 to vector<24x32xf32>
    %9 = arith.maximumf %7, %8 : vector<24x32xf32>
    %c8 = arith.constant 8 : index
    %c0_8 = arith.constant 0 : index
    %10 = vector.load %arg3[%c8, %c0_8] : memref<88x128xf32, #tpu.memory_space<vmem>>, vector<32x16xf32>
    %cst_9 = arith.constant dense<0.000000e+00> : vector<24x16xf32>
    %11 = tpu.matmul %9, %10, %cst_9 {dimension_numbers = #tpu.dot_dimension_numbers<[1], [0], [0], [1], [0, 0, 1, 1], [], []>} : vector<24x32xf32>, vector<32x16xf32>, vector<24x16xf32> -> vector<24x16xf32>
    %cst_10 = arith.constant dense<0.000000e+00> : vector<24x16xf32>
    %12 = tpu.matmul %0, %11, %cst_10 {dimension_numbers = #tpu.dot_dimension_numbers<[1], [0], [0], [1], [0, 0, 1, 1], [], []>} : vector<24x24xf32>, vector<24x16xf32>, vector<24x16xf32> -> vector<24x16xf32>
    %c81 = arith.constant 81 : index
    %c0_11 = arith.constant 0 : index
    %13 = vector.load %arg3[%c81, %c0_11] : memref<88x128xf32, #tpu.memory_space<vmem>>, vector<1x16xf32>
    %14 = vector.broadcast %13 : vector<1x16xf32> to vector<24x16xf32>
    %15 = arith.addf %12, %14 : vector<24x16xf32>
    %cst_12 = arith.constant 0.000000e+00 : f32
    %16 = vector.broadcast %cst_12 : f32 to vector<24x16xf32>
    %17 = arith.maximumf %15, %16 : vector<24x16xf32>
    %c40 = arith.constant 40 : index
    %c0_13 = arith.constant 0 : index
    %18 = vector.load %arg3[%c40, %c0_13] : memref<88x128xf32, #tpu.memory_space<vmem>>, vector<16x8xf32>
    %cst_14 = arith.constant dense<0.000000e+00> : vector<24x8xf32>
    %19 = tpu.matmul %17, %18, %cst_14 {dimension_numbers = #tpu.dot_dimension_numbers<[1], [0], [0], [1], [0, 0, 1, 1], [], []>} : vector<24x16xf32>, vector<16x8xf32>, vector<24x8xf32> -> vector<24x8xf32>
    %c0_15 = arith.constant 0 : index
    %c0_16 = arith.constant 0 : index
    %20 = vector.load %arg2[%c0_15, %c0_16] : memref<16x24xf32, #tpu.memory_space<vmem>>, vector<16x24xf32>
    %cst_17 = arith.constant dense<0.000000e+00> : vector<16x8xf32>
    %21 = tpu.matmul %20, %19, %cst_17 {dimension_numbers = #tpu.dot_dimension_numbers<[1], [0], [0], [1], [0, 0, 1, 1], [], []>} : vector<16x24xf32>, vector<24x8xf32>, vector<16x8xf32> -> vector<16x8xf32>
    %c82 = arith.constant 82 : index
    %c0_18 = arith.constant 0 : index
    %22 = vector.load %arg3[%c82, %c0_18] : memref<88x128xf32, #tpu.memory_space<vmem>>, vector<1x8xf32>
    %23 = vector.broadcast %22 : vector<1x8xf32> to vector<16x8xf32>
    %24 = arith.addf %21, %23 : vector<16x8xf32>
    %25 = vector.extract_strided_slice %24 {offsets = [0, 0], sizes = [8, 8], strides = [1, 1]} : vector<16x8xf32> to vector<8x8xf32>
    %26 = vector.extract_strided_slice %24 {offsets = [8, 0], sizes = [8, 8], strides = [1, 1]} : vector<16x8xf32> to vector<8x8xf32>
    %c56 = arith.constant 56 : index
    %c0_19 = arith.constant 0 : index
    %27 = vector.load %arg3[%c56, %c0_19] : memref<88x128xf32, #tpu.memory_space<vmem>>, vector<8x8xf32>
    %cst_20 = arith.constant dense<0.000000e+00> : vector<8x8xf32>
    %28 = tpu.matmul %25, %27, %cst_20 {dimension_numbers = #tpu.dot_dimension_numbers<[1], [0], [0], [1], [0, 0, 1, 1], [], []>} : vector<8x8xf32>, vector<8x8xf32>, vector<8x8xf32> -> vector<8x8xf32>
    %c64 = arith.constant 64 : index
    %c0_21 = arith.constant 0 : index
    %29 = vector.load %arg3[%c64, %c0_21] : memref<88x128xf32, #tpu.memory_space<vmem>>, vector<8x8xf32>
    %cst_22 = arith.constant dense<0.000000e+00> : vector<8x8xf32>
    %30 = tpu.matmul %26, %29, %cst_22 {dimension_numbers = #tpu.dot_dimension_numbers<[1], [0], [0], [1], [0, 0, 1, 1], [], []>} : vector<8x8xf32>, vector<8x8xf32>, vector<8x8xf32> -> vector<8x8xf32>
    %31 = arith.addf %28, %30 : vector<8x8xf32>
    %c83 = arith.constant 83 : index
    %c0_23 = arith.constant 0 : index
    %32 = vector.load %arg3[%c83, %c0_23] : memref<88x128xf32, #tpu.memory_space<vmem>>, vector<1x8xf32>
    %33 = vector.broadcast %32 : vector<1x8xf32> to vector<8x8xf32>
    %34 = arith.addf %31, %33 : vector<8x8xf32>
    %cst_24 = arith.constant 0.000000e+00 : f32
    %35 = vector.broadcast %cst_24 : f32 to vector<8x8xf32>
    %36 = arith.maximumf %34, %35 : vector<8x8xf32>
    %c72 = arith.constant 72 : index
    %c0_25 = arith.constant 0 : index
    %37 = vector.load %arg3[%c72, %c0_25] : memref<88x128xf32, #tpu.memory_space<vmem>>, vector<8x128xf32>
    %cst_26 = arith.constant dense<0.000000e+00> : vector<8x128xf32>
    %38 = tpu.matmul %36, %37, %cst_26 {dimension_numbers = #tpu.dot_dimension_numbers<[1], [0], [0], [1], [0, 0, 1, 1], [], []>} : vector<8x8xf32>, vector<8x128xf32>, vector<8x128xf32> -> vector<8x128xf32>
    %c84 = arith.constant 84 : index
    %c0_27 = arith.constant 0 : index
    %39 = vector.load %arg3[%c84, %c0_27] : memref<88x128xf32, #tpu.memory_space<vmem>>, vector<1x128xf32>
    %40 = vector.broadcast %39 : vector<1x128xf32> to vector<8x128xf32>
    %41 = arith.addf %38, %40 : vector<8x128xf32>
    %c0_28 = arith.constant 0 : index
    %c0_29 = arith.constant 0 : index
    %42 = vector.load %arg4[%c0_28, %c0_29] : memref<8x128xf32, #tpu.memory_space<vmem>>, vector<8x128xf32>
    tpu.vector_store %arg4[%c0_28, %c0_29], %41 {strides = array<i32>} : memref<8x128xf32, #tpu.memory_space<vmem>>, vector<8x128xf32>,
    return
  }
}

</mosaic_0001>

<llo_original>
// kernel: bgnn_forward.1
$region0: #{bgnn_forward.1}
  #allocation0 [shape = 'u32[]', space=smem, size = 0x4, offset = 0x4, fixed_abs, tag = 'smem constant byte address 0x4 - core index']
  #allocation1 [shape = 'u32[144,128]{1,0:T(1,128)}', space=vmem, size = 0x12000, scoped, tag = 'internal scratch']
  %s0 = inlined_call_operand.vmem [shape: f32[24,24], index: 0, kind: input, shape index: {}]
  %s1 = inlined_call_operand.vmem [shape: f32[24,4], index: 1, kind: input, shape index: {}]
  %s2 = inlined_call_operand.hbm [shape: f32[16,24], index: 2, kind: input, shape index: {}]
  %s3 = inlined_call_operand.hbm [shape: f32[88,128], index: 3, kind: input, shape index: {}]
  %s4 = inlined_call_operand.hbm [shape: f32[8,128], index: 4, kind: output, shape index: {}]
  %s5 = sld [smem:[#allocation0]]
  $region34: #{bgnn_forward.1} parent=0
    _
  %s7 = ssub.s32 1, %s5
  %s8 = scalar_select 0, %s7, %s5
  $region1: #{bgnn_forward.1} parent=0
    #allocation2 [shape = 'u8[8192]{0}', space=vmem, size = 0x2000, scoped, tag = 'input window, operand 2, single buffered']
    #allocation3 [shape = 's32[1]{0}', space=sflag, size = 0x4, scoped, tag = 'scoped memory for bgnn_forward.1']
    #allocation4 [shape = 's32[1]{0}', space=sflag, size = 0x4, scoped, tag = 'scoped memory for bgnn_forward.1']
    #allocation5 [shape = 'u8[45056]{0}', space=vmem, size = 0xb000, scoped, tag = 'input window, operand 3, single buffered']
    #allocation6 [shape = 's32[1]{0}', space=sflag, size = 0x4, scoped, tag = 'scoped memory for bgnn_forward.1']
    #allocation7 [shape = 'u8[4096]{0}', space=vmem, size = 0x1000, scoped, tag = 'output window, operand 0, single buffered']
    %9 = vsyncpa [#allocation3], 0
    %10 = vsyncpa [#allocation6], 0
    %11 = vsyncpa [#allocation4], 0
    // Predicated region
    $region2: #{bgnn_forward.1} parent=1 // pred_check
      _
    $region3: #{bgnn_forward.1} parent=1 // pred_check_branch
      %13 = sbr.rel (0) target = $region5
    $region4: #{bgnn_forward.1} parent=1 // pred_region
      _
    $region5: #{bgnn_forward.1} parent=1 // pred_fallthru
      _
    // Predicated region
    $region6: #{bgnn_forward.1} parent=1 // pred_check
      _
    $region7: #{bgnn_forward.1} parent=1 // pred_check_branch
      %15 = sbr.rel (0) target = $region9
    $region8: #{bgnn_forward.1} parent=1 // pred_region
      _
    $region9: #{bgnn_forward.1} parent=1 // pred_fallthru
      _
    // Predicated region
    $region10: #{bgnn_forward.1} parent=1 // pred_check
      _
    $region11: #{bgnn_forward.1} parent=1 // pred_check_branch
      %17 = sbr.rel (0) target = $region13
    $region12: #{bgnn_forward.1} parent=1 // pred_region
      %s19 = ssub.s32 256, 256
      %20 = vsyncadd [#allocation3], %s19
      %s21 = sshll.u32 [#allocation2], 4
      %s22 = int_to_ptr.vmem [resolvable:$true] %s21
      %27 = dma.hbm_to_vmem [thread:$0]  %s2, 256, %s22, [#allocation3], 128, 128, 8
    $region13: #{bgnn_forward.1} parent=1 // pred_fallthru
      _
    // Predicated region
    $region14: #{bgnn_forward.1} parent=1 // pred_check
      _
    $region15: #{bgnn_forward.1} parent=1 // pred_check_branch
      %29 = sbr.rel (0) target = $region17
    $region16: #{bgnn_forward.1} parent=1 // pred_region
      %s31 = ssub.s32 1408, 1408
      %32 = vsyncadd [#allocation6], %s31
      %s33 = sshll.u32 [#allocation5], 4
      %s34 = int_to_ptr.vmem [resolvable:$true] %s33
      %39 = dma.hbm_to_vmem [thread:$0]  %s3, 1408, %s34, [#allocation6], 128, 128, 8
    $region17: #{bgnn_forward.1} parent=1 // pred_fallthru
      _
    // Predicated region
    $region18: #{bgnn_forward.1} parent=1 // pred_check
      _
    $region19: #{bgnn_forward.1} parent=1 // pred_check_branch
      %41 = sbr.rel (0) target = $region21
    $region20: #{bgnn_forward.1} parent=1 // pred_region
      %42 = dma.done [#allocation3], 256
    $region21: #{bgnn_forward.1} parent=1 // pred_fallthru
      _
    // Predicated region
    $region22: #{bgnn_forward.1} parent=1 // pred_check
      _
    $region23: #{bgnn_forward.1} parent=1 // pred_check_branch
      %44 = sbr.rel (0) target = $region25
    $region24: #{bgnn_forward.1} parent=1 // pred_region
      %45 = dma.done [#allocation6], 1408
    $region25: #{bgnn_forward.1} parent=1 // pred_fallthru
      _
    %v46 = vld [vmem:[%s0] sm:$0xff]
    %v47 = vld [vmem:[%s0 + $0x8] sm:$0xff]
    %v48 = vld [vmem:[%s0 + $0x10] sm:$0xff]
    %v49 = vld [vmem:[%s1] sm:$0xff]
    %v50 = vld [vmem:[%s1 + $0x8] sm:$0xff]
    %v51 = vld [vmem:[%s1 + $0x10] sm:$0xff]
    %v52 = vld [vmem:[#allocation5] sm:$0xf]
    %vm53 = vcmask 31744
    %v55 = vsel %vm53, %v49, 0
    %v58 = vsel %vm53, %v50, 0
    %v61 = vsel %vm53, %v51, 0
    %vm63 = vcmask 1043456
    %v65 = vsel %vm63, %v52, 0
    %67 = vmatprep.subr.mxu0 0.0
    %68 = vmatpush1.msra.mxu0 %v65
    %69 = vmatprep.subr.mxu0 0.0
    %70 = vmatpush1.msra.mxu0 0.0
    %71 = vmatprep.subr.mxu0 0.0
    %72 = vmatpush1.msra.mxu0 0.0
    %73 = vmatprep.subr.mxu0 0.0
    %74 = vmatpush1.msra.mxu0 0.0
    %75 = vmatprep.subr.mxu0 0.0
    %76 = vmatpush1.msra.mxu0 0.0
    %77 = vmatprep.subr.mxu0 0.0
    %78 = vmatpush1.msra.mxu0 0.0
    %79 = vmatprep.subr.mxu0 0.0
    %80 = vmatpush1.msra.mxu0 0.0
    %81 = vmatprep.subr.mxu0 0.0
    %82 = vmatpush1.msra.mxu0 0.0
    %83 = vmatprep.subr.mxu0 0.0
    %84 = vmatpush1.msra.mxu0 0.0
    %85 = vmatprep.subr.mxu0 0.0
    %86 = vmatpush1.msra.mxu0 0.0
    %87 = vmatprep.subr.mxu0 0.0
    %88 = vmatpush1.msra.mxu0 0.0
    %89 = vmatprep.subr.mxu0 0.0
    %90 = vmatpush1.msra.mxu0 0.0
    %91 = vmatprep.subr.mxu0 0.0
    %92 = vmatpush1.msra.mxu0 0.0
    %93 = vmatprep.subr.mxu0 0.0
    %94 = vmatpush1.msra.mxu0 0.0
    %95 = vmatprep.subr.mxu0 0.0
    %96 = vmatpush1.msra.mxu0 0.0
    %97 = vmatprep.subr.mxu0 0.0
    %98 = vmatpush1.msra.mxu0 0.0
    %99 = vmatprep.subr.mxu0 0.0
    %100 = vmatpush1.msra.mxu0 0.0
    %101 = vmatprep.subr.mxu0 0.0
    %102 = vmatpush1.msra.mxu0 0.0
    %103 = vmatprep.subr.mxu0 0.0
    %104 = vmatpush1.msra.mxu0 0.0
    %105 = vmatprep.subr.mxu0 0.0
    %106 = vmatpush1.msra.mxu0 0.0
    %107 = vmatprep.subr.mxu0 0.0
    %108 = vmatpush1.msra.mxu0 0.0
    %109 = vmatprep.subr.mxu0 0.0
    %110 = vmatpush1.msra.mxu0 0.0
    %111 = vmatprep.subr.mxu0 0.0
    %112 = vmatpush1.msra.mxu0 0.0
    %113 = vmatprep.subr.mxu0 0.0
    %114 = vmatpush1.msra.mxu0 0.0
    %115 = vmatprep.subr.mxu0 0.0
    %116 = vmatpush1.msra.mxu0 0.0
    %117 = vmatprep.subr.mxu0 0.0
    %118 = vmatpush1.msra.mxu0 0.0
    %119 = vmatprep.subr.mxu0 0.0
    %120 = vmatpush1.msra.mxu0 0.0
    %121 = vmatprep.subr.mxu0 0.0
    %122 = vmatpush1.msra.mxu0 0.0
    %123 = vmatprep.subr.mxu0 0.0
    %124 = vmatpush1.msra.mxu0 0.0
    %125 = vmatprep.subr.mxu0 0.0
    %126 = vmatpush1.msra.mxu0 0.0
    %127 = vmatprep.subr.mxu0 0.0
    %128 = vmatpush1.msra.mxu0 0.0
    %129 = vmatprep.subr.mxu0 0.0
    %130 = vmatpush1.msra.mxu0 0.0
    %131 = vmatprep.mubr.f32.mxu0 0.0
    %132 = vmatmul.mubr.f32.gmra.mrb[0].mxu0 %v55
    %v133 = vpop.f32.mrb[0].mxu0
    %v134 = vadd.f32 0.0, %v133
    %v135 = vpop.f32.mrb[0].mxu0
    %136 = vmatprep.mubr.f32.mxu0 0.0
    %137 = vmatmul.mubr.f32.gmra.mrb[0].mxu0 %v58
    %v138 = vpop.f32.mrb[0].mxu0
    %v139 = vadd.f32 0.0, %v138
    %v140 = vpop.f32.mrb[0].mxu0
    %141 = vmatprep.mubr.f32.mxu0 0.0
    %142 = vmatmul.mubr.f32.gmra.mrb[0].mxu0 %v61
    %v143 = vpop.f32.mrb[0].mxu0
    %v144 = vadd.f32 0.0, %v143
    %v145 = vpop.f32.mrb[0].mxu0
    %146 = vdwg.mxu0
    %v147 = vld [vmem:[#allocation5 + $0x50] sm:$0x1]
    %v148 = vlaneseq
    %v149 = vshrl.u32 %v148, 7
    %v150 = vsub.s32 0, %v149
    %v151 = vrot.slane %v147, %v150
    %vm152 = vcmask 195584
    %v154 = vsel %vm152, %v46, 0
    %v157 = vsel %vm152, %v47, 0
    %v160 = vsel %vm152, %v48, 0
    %162 = vmatprep.subr.mxu0 0.0
    %163 = vmatpush1.msra.mxu0 %v134
    %164 = vmatprep.subr.mxu0 0.0
    %165 = vmatpush1.msra.mxu0 %v139
    %166 = vmatprep.subr.mxu0 0.0
    %167 = vmatpush1.msra.mxu0 %v144
    %168 = vmatprep.subr.mxu0 0.0
    %169 = vmatpush1.msra.mxu0 0.0
    %170 = vmatprep.subr.mxu0 0.0
    %171 = vmatpush1.msra.mxu0 0.0
    %172 = vmatprep.subr.mxu0 0.0
    %173 = vmatpush1.msra.mxu0 0.0
    %174 = vmatprep.subr.mxu0 0.0
    %175 = vmatpush1.msra.mxu0 0.0
    %176 = vmatprep.subr.mxu0 0.0
    %177 = vmatpush1.msra.mxu0 0.0
    %178 = vmatprep.subr.mxu0 0.0
    %179 = vmatpush1.msra.mxu0 0.0
    %180 = vmatprep.subr.mxu0 0.0
    %181 = vmatpush1.msra.mxu0 0.0
    %182 = vmatprep.subr.mxu0 0.0
    %183 = vmatpush1.msra.mxu0 0.0
    %184 = vmatprep.subr.mxu0 0.0
    %185 = vmatpush1.msra.mxu0 0.0
    %186 = vmatprep.subr.mxu0 0.0
    %187 = vmatpush1.msra.mxu0 0.0
    %188 = vmatprep.subr.mxu0 0.0
    %189 = vmatpush1.msra.mxu0 0.0
    %190 = vmatprep.subr.mxu0 0.0
    %191 = vmatpush1.msra.mxu0 0.0
    %192 = vmatprep.subr.mxu0 0.0
    %193 = vmatpush1.msra.mxu0 0.0
    %194 = vmatprep.subr.mxu0 0.0
    %195 = vmatpush1.msra.mxu0 0.0
    %196 = vmatprep.subr.mxu0 0.0
    %197 = vmatpush1.msra.mxu0 0.0
    %198 = vmatprep.subr.mxu0 0.0
    %199 = vmatpush1.msra.mxu0 0.0
    %200 = vmatprep.subr.mxu0 0.0
    %201 = vmatpush1.msra.mxu0 0.0
    %202 = vmatprep.subr.mxu0 0.0
    %203 = vmatpush1.msra.mxu0 0.0
    %204 = vmatprep.subr.mxu0 0.0
    %205 = vmatpush1.msra.mxu0 0.0
    %206 = vmatprep.subr.mxu0 0.0
    %207 = vmatpush1.msra.mxu0 0.0
    %208 = vmatprep.subr.mxu0 0.0
    %209 = vmatpush1.msra.mxu0 0.0
    %210 = vmatprep.subr.mxu0 0.0
    %211 = vmatpush1.msra.mxu0 0.0
    %212 = vmatprep.subr.mxu0 0.0
    %213 = vmatpush1.msra.mxu0 0.0
    %214 = vmatprep.subr.mxu0 0.0
    %215 = vmatpush1.msra.mxu0 0.0
    %216 = vmatprep.subr.mxu0 0.0
    %217 = vmatpush1.msra.mxu0 0.0
    %218 = vmatprep.subr.mxu0 0.0
    %219 = vmatpush1.msra.mxu0 0.0
    %220 = vmatprep.subr.mxu0 0.0
    %221 = vmatpush1.msra.mxu0 0.0
    %222 = vmatprep.subr.mxu0 0.0
    %223 = vmatpush1.msra.mxu0 0.0
    %224 = vmatprep.subr.mxu0 0.0
    %225 = vmatpush1.msra.mxu0 0.0
    %226 = vmatprep.mubr.f32.mxu0 0.0
    %227 = vmatmul.mubr.f32.gmra.mrb[0].mxu0 %v154
    %v228 = vpop.f32.mrb[0].mxu0
    %v229 = vadd.f32 %v151, %v228
    %v230 = vpop.f32.mrb[0].mxu0
    %231 = vmatprep.mubr.f32.mxu0 0.0
    %232 = vmatmul.mubr.f32.gmra.mrb[0].mxu0 %v157
    %v233 = vpop.f32.mrb[0].mxu0
    %v234 = vadd.f32 %v151, %v233
    %v235 = vpop.f32.mrb[0].mxu0
    %236 = vmatprep.mubr.f32.mxu0 0.0
    %237 = vmatmul.mubr.f32.gmra.mrb[0].mxu0 %v160
    %v238 = vpop.f32.mrb[0].mxu0
    %v239 = vadd.f32 %v151, %v238
    %v240 = vpop.f32.mrb[0].mxu0
    %241 = vdwg.mxu0
    %v242 = vmax.f32 %v229, 0.0
    %v243 = vmax.f32 %v234, 0.0
    %v244 = vmax.f32 %v239, 0.0
    %v245 = vld [vmem:[#allocation5 + $0x8] sm:$0xff]
    %v246 = vld [vmem:[#allocation5 + $0x10] sm:$0xff]
    %v247 = vld [vmem:[#allocation5 + $0x18] sm:$0xff]
    %v248 = vld [vmem:[#allocation5 + $0x20] sm:$0xff]
    %vm249 = vcmask 261120
    %v251 = vsel %vm249, %v242, 0
    %v254 = vsel %vm249, %v243, 0
    %v257 = vsel %vm249, %v244, 0
    %259 = vmatprep.subr.mxu0 0.0
    %260 = vmatpush1.msra.mxu0 %v245
    %261 = vmatprep.subr.mxu0 0.0
    %262 = vmatpush1.msra.mxu0 %v246
    %263 = vmatprep.subr.mxu0 0.0
    %264 = vmatpush1.msra.mxu0 %v247
    %265 = vmatprep.subr.mxu0 0.0
    %266 = vmatpush1.msra.mxu0 %v248
    %267 = vmatprep.subr.mxu0 0.0
    %268 = vmatpush1.msra.mxu0 0.0
    %269 = vmatprep.subr.mxu0 0.0
    %270 = vmatpush1.msra.mxu0 0.0
    %271 = vmatprep.subr.mxu0 0.0
    %272 = vmatpush1.msra.mxu0 0.0
    %273 = vmatprep.subr.mxu0 0.0
    %274 = vmatpush1.msra.mxu0 0.0
    %275 = vmatprep.subr.mxu0 0.0
    %276 = vmatpush1.msra.mxu0 0.0
    %277 = vmatprep.subr.mxu0 0.0
    %278 = vmatpush1.msra.mxu0 0.0
    %279 = vmatprep.subr.mxu0 0.0
    %280 = vmatpush1.msra.mxu0 0.0
    %281 = vmatprep.subr.mxu0 0.0
    %282 = vmatpush1.msra.mxu0 0.0
    %283 = vmatprep.subr.mxu0 0.0
    %284 = vmatpush1.msra.mxu0 0.0
    %285 = vmatprep.subr.mxu0 0.0
    %286 = vmatpush1.msra.mxu0 0.0
    %287 = vmatprep.subr.mxu0 0.0
    %288 = vmatpush1.msra.mxu0 0.0
    %289 = vmatprep.subr.mxu0 0.0
    %290 = vmatpush1.msra.mxu0 0.0
    %291 = vmatprep.subr.mxu0 0.0
    %292 = vmatpush1.msra.mxu0 0.0
    %293 = vmatprep.subr.mxu0 0.0
    %294 = vmatpush1.msra.mxu0 0.0
    %295 = vmatprep.subr.mxu0 0.0
    %296 = vmatpush1.msra.mxu0 0.0
    %297 = vmatprep.subr.mxu0 0.0
    %298 = vmatpush1.msra.mxu0 0.0
    %299 = vmatprep.subr.mxu0 0.0
    %300 = vmatpush1.msra.mxu0 0.0
    %301 = vmatprep.subr.mxu0 0.0
    %302 = vmatpush1.msra.mxu0 0.0
    %303 = vmatprep.subr.mxu0 0.0
    %304 = vmatpush1.msra.mxu0 0.0
    %305 = vmatprep.subr.mxu0 0.0
    %306 = vmatpush1.msra.mxu0 0.0
    %307 = vmatprep.subr.mxu0 0.0
    %308 = vmatpush1.msra.mxu0 0.0
    %309 = vmatprep.subr.mxu0 0.0
    %310 = vmatpush1.msra.mxu0 0.0
    %311 = vmatprep.subr.mxu0 0.0
    %312 = vmatpush1.msra.mxu0 0.0
    %313 = vmatprep.subr.mxu0 0.0
    %314 = vmatpush1.msra.mxu0 0.0
    %315 = vmatprep.subr.mxu0 0.0
    %316 = vmatpush1.msra.mxu0 0.0
    %317 = vmatprep.subr.mxu0 0.0
    %318 = vmatpush1.msra.mxu0 0.0
    %319 = vmatprep.subr.mxu0 0.0
    %320 = vmatpush1.msra.mxu0 0.0
    %321 = vmatprep.subr.mxu0 0.0
    %322 = vmatpush1.msra.mxu0 0.0
    %323 = vmatprep.mubr.f32.mxu0 0.0
    %324 = vmatmul.mubr.f32.gmra.mrb[0].mxu0 %v251
    %v325 = vpop.f32.mrb[0].mxu0
    %v326 = vadd.f32 0.0, %v325
    %v327 = vpop.f32.mrb[0].mxu0
    %328 = vmatprep.mubr.f32.mxu0 0.0
    %329 = vmatmul.mubr.f32.gmra.mrb[0].mxu0 %v254
    %v330 = vpop.f32.mrb[0].mxu0
    %v331 = vadd.f32 0.0, %v330
    %v332 = vpop.f32.mrb[0].mxu0
    %333 = vmatprep.mubr.f32.mxu0 0.0
    %334 = vmatmul.mubr.f32.gmra.mrb[0].mxu0 %v257
    %v335 = vpop.f32.mrb[0].mxu0
    %v336 = vadd.f32 0.0, %v335
    %v337 = vpop.f32.mrb[0].mxu0
    %338 = vdwg.mxu0
    %v339 = vld [vmem:[#allocation5 + $0x51] sm:$0x1]
    %v340 = vlaneseq
    %v341 = vshrl.u32 %v340, 7
    %v342 = vsub.s32 0, %v341
    %v343 = vrot.slane %v339, %v342
    %344 = vmatprep.subr.mxu0 0.0
    %345 = vmatpush1.msra.mxu0 %v326
    %346 = vmatprep.subr.mxu0 0.0
    %347 = vmatpush1.msra.mxu0 %v331
    %348 = vmatprep.subr.mxu0 0.0
    %349 = vmatpush1.msra.mxu0 %v336
    %350 = vmatprep.subr.mxu0 0.0
    %351 = vmatpush1.msra.mxu0 0.0
    %352 = vmatprep.subr.mxu0 0.0
    %353 = vmatpush1.msra.mxu0 0.0
    %354 = vmatprep.subr.mxu0 0.0
    %355 = vmatpush1.msra.mxu0 0.0
    %356 = vmatprep.subr.mxu0 0.0
    %357 = vmatpush1.msra.mxu0 0.0
    %358 = vmatprep.subr.mxu0 0.0
    %359 = vmatpush1.msra.mxu0 0.0
    %360 = vmatprep.subr.mxu0 0.0
    %361 = vmatpush1.msra.mxu0 0.0
    %362 = vmatprep.subr.mxu0 0.0
    %363 = vmatpush1.msra.mxu0 0.0
    %364 = vmatprep.subr.mxu0 0.0
    %365 = vmatpush1.msra.mxu0 0.0
    %366 = vmatprep.subr.mxu0 0.0
    %367 = vmatpush1.msra.mxu0 0.0
    %368 = vmatprep.subr.mxu0 0.0
    %369 = vmatpush1.msra.mxu0 0.0
    %370 = vmatprep.subr.mxu0 0.0
    %371 = vmatpush1.msra.mxu0 0.0
    %372 = vmatprep.subr.mxu0 0.0
    %373 = vmatpush1.msra.mxu0 0.0
    %374 = vmatprep.subr.mxu0 0.0
    %375 = vmatpush1.msra.mxu0 0.0
    %376 = vmatprep.subr.mxu0 0.0
    %377 = vmatpush1.msra.mxu0 0.0
    %378 = vmatprep.subr.mxu0 0.0
    %379 = vmatpush1.msra.mxu0 0.0
    %380 = vmatprep.subr.mxu0 0.0
    %381 = vmatpush1.msra.mxu0 0.0
    %382 = vmatprep.subr.mxu0 0.0
    %383 = vmatpush1.msra.mxu0 0.0
    %384 = vmatprep.subr.mxu0 0.0
    %385 = vmatpush1.msra.mxu0 0.0
    %386 = vmatprep.subr.mxu0 0.0
    %387 = vmatpush1.msra.mxu0 0.0
    %388 = vmatprep.subr.mxu0 0.0
    %389 = vmatpush1.msra.mxu0 0.0
    %390 = vmatprep.subr.mxu0 0.0
    %391 = vmatpush1.msra.mxu0 0.0
    %392 = vmatprep.subr.mxu0 0.0
    %393 = vmatpush1.msra.mxu0 0.0
    %394 = vmatprep.subr.mxu0 0.0
    %395 = vmatpush1.msra.mxu0 0.0
    %396 = vmatprep.subr.mxu0 0.0
    %397 = vmatpush1.msra.mxu0 0.0
    %398 = vmatprep.subr.mxu0 0.0
    %399 = vmatpush1.msra.mxu0 0.0
    %400 = vmatprep.subr.mxu0 0.0
    %401 = vmatpush1.msra.mxu0 0.0
    %402 = vmatprep.subr.mxu0 0.0
    %403 = vmatpush1.msra.mxu0 0.0
    %404 = vmatprep.subr.mxu0 0.0
    %405 = vmatpush1.msra.mxu0 0.0
    %406 = vmatprep.subr.mxu0 0.0
    %407 = vmatpush1.msra.mxu0 0.0
    %408 = vmatprep.mubr.f32.mxu0 0.0
    %409 = vmatmul.mubr.f32.gmra.mrb[0].mxu0 %v154
    %v410 = vpop.f32.mrb[0].mxu0
    %v411 = vadd.f32 %v343, %v410
    %v412 = vpop.f32.mrb[0].mxu0
    %413 = vmatprep.mubr.f32.mxu0 0.0
    %414 = vmatmul.mubr.f32.gmra.mrb[0].mxu0 %v157
    %v415 = vpop.f32.mrb[0].mxu0
    %v416 = vadd.f32 %v343, %v415
    %v417 = vpop.f32.mrb[0].mxu0
    %418 = vmatprep.mubr.f32.mxu0 0.0
    %419 = vmatmul.mubr.f32.gmra.mrb[0].mxu0 %v160
    %v420 = vpop.f32.mrb[0].mxu0
    %v421 = vadd.f32 %v343, %v420
    %v422 = vpop.f32.mrb[0].mxu0
    %423 = vdwg.mxu0
    %v424 = vmax.f32 %v411, 0.0
    %v425 = vmax.f32 %v416, 0.0
    %v426 = vmax.f32 %v421, 0.0
    %v427 = vld [vmem:[#allocation5 + $0x28] sm:$0xff]
    %v428 = vld [vmem:[#allocation5 + $0x30] sm:$0xff]
    %vm429 = vcmask 130048
    %v431 = vsel %vm429, %v424, 0
    %v434 = vsel %vm429, %v425, 0
    %v437 = vsel %vm429, %v426, 0
    %439 = vmatprep.subr.mxu0 0.0
    %440 = vmatpush1.msra.mxu0 %v427
    %441 = vmatprep.subr.mxu0 0.0
    %442 = vmatpush1.msra.mxu0 %v428
    %443 = vmatprep.subr.mxu0 0.0
    %444 = vmatpush1.msra.mxu0 0.0
    %445 = vmatprep.subr.mxu0 0.0
    %446 = vmatpush1.msra.mxu0 0.0
    %447 = vmatprep.subr.mxu0 0.0
    %448 = vmatpush1.msra.mxu0 0.0
    %449 = vmatprep.subr.mxu0 0.0
    %450 = vmatpush1.msra.mxu0 0.0
    %451 = vmatprep.subr.mxu0 0.0
    %452 = vmatpush1.msra.mxu0 0.0
    %453 = vmatprep.subr.mxu0 0.0
    %454 = vmatpush1.msra.mxu0 0.0
    %455 = vmatprep.subr.mxu0 0.0
    %456 = vmatpush1.msra.mxu0 0.0
    %457 = vmatprep.subr.mxu0 0.0
    %458 = vmatpush1.msra.mxu0 0.0
    %459 = vmatprep.subr.mxu0 0.0
    %460 = vmatpush1.msra.mxu0 0.0
    %461 = vmatprep.subr.mxu0 0.0
    %462 = vmatpush1.msra.mxu0 0.0
    %463 = vmatprep.subr.mxu0 0.0
    %464 = vmatpush1.msra.mxu0 0.0
    %465 = vmatprep.subr.mxu0 0.0
    %466 = vmatpush1.msra.mxu0 0.0
    %467 = vmatprep.subr.mxu0 0.0
    %468 = vmatpush1.msra.mxu0 0.0
    %469 = vmatprep.subr.mxu0 0.0
    %470 = vmatpush1.msra.mxu0 0.0
    %471 = vmatprep.subr.mxu0 0.0
    %472 = vmatpush1.msra.mxu0 0.0
    %473 = vmatprep.subr.mxu0 0.0
    %474 = vmatpush1.msra.mxu0 0.0
    %475 = vmatprep.subr.mxu0 0.0
    %476 = vmatpush1.msra.mxu0 0.0
    %477 = vmatprep.subr.mxu0 0.0
    %478 = vmatpush1.msra.mxu0 0.0
    %479 = vmatprep.subr.mxu0 0.0
    %480 = vmatpush1.msra.mxu0 0.0
    %481 = vmatprep.subr.mxu0 0.0
    %482 = vmatpush1.msra.mxu0 0.0
    %483 = vmatprep.subr.mxu0 0.0
    %484 = vmatpush1.msra.mxu0 0.0
    %485 = vmatprep.subr.mxu0 0.0
    %486 = vmatpush1.msra.mxu0 0.0
    %487 = vmatprep.subr.mxu0 0.0
    %488 = vmatpush1.msra.mxu0 0.0
    %489 = vmatprep.subr.mxu0 0.0
    %490 = vmatpush1.msra.mxu0 0.0
    %491 = vmatprep.subr.mxu0 0.0
    %492 = vmatpush1.msra.mxu0 0.0
    %493 = vmatprep.subr.mxu0 0.0
    %494 = vmatpush1.msra.mxu0 0.0
    %495 = vmatprep.subr.mxu0 0.0
    %496 = vmatpush1.msra.mxu0 0.0
    %497 = vmatprep.subr.mxu0 0.0
    %498 = vmatpush1.msra.mxu0 0.0
    %499 = vmatprep.subr.mxu0 0.0
    %500 = vmatpush1.msra.mxu0 0.0
    %501 = vmatprep.subr.mxu0 0.0
    %502 = vmatpush1.msra.mxu0 0.0
    %503 = vmatprep.mubr.f32.mxu0 0.0
    %504 = vmatmul.mubr.f32.gmra.mrb[0].mxu0 %v431
    %v505 = vpop.f32.mrb[0].mxu0
    %v506 = vadd.f32 0.0, %v505
    %v507 = vpop.f32.mrb[0].mxu0
    %508 = vmatprep.mubr.f32.mxu0 0.0
    %509 = vmatmul.mubr.f32.gmra.mrb[0].mxu0 %v434
    %v510 = vpop.f32.mrb[0].mxu0
    %v511 = vadd.f32 0.0, %v510
    %v512 = vpop.f32.mrb[0].mxu0
    %513 = vmatprep.mubr.f32.mxu0 0.0
    %514 = vmatmul.mubr.f32.gmra.mrb[0].mxu0 %v437
    %v515 = vpop.f32.mrb[0].mxu0
    %v516 = vadd.f32 0.0, %v515
    %v517 = vpop.f32.mrb[0].mxu0
    %518 = vdwg.mxu0
    %v519 = vld [vmem:[#allocation2] sm:$0xff]
    %v520 = vld [vmem:[#allocation2 + $0x8] sm:$0xff]
    %v521 = vld [vmem:[#allocation5 + $0x52] sm:$0x1]
    %v522 = vlaneseq
    %v523 = vshrl.u32 %v522, 7
    %v524 = vsub.s32 0, %v523
    %v525 = vrot.slane %v521, %v524
    %v527 = vsel %vm152, %v519, 0
    %v530 = vsel %vm152, %v520, 0
    %532 = vmatprep.subr.mxu0 0.0
    %533 = vmatpush1.msra.mxu0 %v506
    %534 = vmatprep.subr.mxu0 0.0
    %535 = vmatpush1.msra.mxu0 %v511
    %536 = vmatprep.subr.mxu0 0.0
    %537 = vmatpush1.msra.mxu0 %v516
    %538 = vmatprep.subr.mxu0 0.0
    %539 = vmatpush1.msra.mxu0 0.0
    %540 = vmatprep.subr.mxu0 0.0
    %541 = vmatpush1.msra.mxu0 0.0
    %542 = vmatprep.subr.mxu0 0.0
    %543 = vmatpush1.msra.mxu0 0.0
    %544 = vmatprep.subr.mxu0 0.0
    %545 = vmatpush1.msra.mxu0 0.0
    %546 = vmatprep.subr.mxu0 0.0
    %547 = vmatpush1.msra.mxu0 0.0
    %548 = vmatprep.subr.mxu0 0.0
    %549 = vmatpush1.msra.mxu0 0.0
    %550 = vmatprep.subr.mxu0 0.0
    %551 = vmatpush1.msra.mxu0 0.0
    %552 = vmatprep.subr.mxu0 0.0
    %553 = vmatpush1.msra.mxu0 0.0
    %554 = vmatprep.subr.mxu0 0.0
    %555 = vmatpush1.msra.mxu0 0.0
    %556 = vmatprep.subr.mxu0 0.0
    %557 = vmatpush1.msra.mxu0 0.0
    %558 = vmatprep.subr.mxu0 0.0
    %559 = vmatpush1.msra.mxu0 0.0
    %560 = vmatprep.subr.mxu0 0.0
    %561 = vmatpush1.msra.mxu0 0.0
    %562 = vmatprep.subr.mxu0 0.0
    %563 = vmatpush1.msra.mxu0 0.0
    %564 = vmatprep.subr.mxu0 0.0
    %565 = vmatpush1.msra.mxu0 0.0
    %566 = vmatprep.subr.mxu0 0.0
    %567 = vmatpush1.msra.mxu0 0.0
    %568 = vmatprep.subr.mxu0 0.0
    %569 = vmatpush1.msra.mxu0 0.0
    %570 = vmatprep.subr.mxu0 0.0
    %571 = vmatpush1.msra.mxu0 0.0
    %572 = vmatprep.subr.mxu0 0.0
    %573 = vmatpush1.msra.mxu0 0.0
    %574 = vmatprep.subr.mxu0 0.0
    %575 = vmatpush1.msra.mxu0 0.0
    %576 = vmatprep.subr.mxu0 0.0
    %577 = vmatpush1.msra.mxu0 0.0
    %578 = vmatprep.subr.mxu0 0.0
    %579 = vmatpush1.msra.mxu0 0.0
    %580 = vmatprep.subr.mxu0 0.0
    %581 = vmatpush1.msra.mxu0 0.0
    %582 = vmatprep.subr.mxu0 0.0
    %583 = vmatpush1.msra.mxu0 0.0
    %584 = vmatprep.subr.mxu0 0.0
    %585 = vmatpush1.msra.mxu0 0.0
    %586 = vmatprep.subr.mxu0 0.0
    %587 = vmatpush1.msra.mxu0 0.0
    %588 = vmatprep.subr.mxu0 0.0
    %589 = vmatpush1.msra.mxu0 0.0
    %590 = vmatprep.subr.mxu0 0.0
    %591 = vmatpush1.msra.mxu0 0.0
    %592 = vmatprep.subr.mxu0 0.0
    %593 = vmatpush1.msra.mxu0 0.0
    %594 = vmatprep.subr.mxu0 0.0
    %595 = vmatpush1.msra.mxu0 0.0
    %596 = vmatprep.mubr.f32.mxu0 0.0
    %597 = vmatmul.mubr.f32.gmra.mrb[0].mxu0 %v527
    %v598 = vpop.f32.mrb[0].mxu0
    %v599 = vadd.f32 %v525, %v598
    %v600 = vpop.f32.mrb[0].mxu0
    %601 = vmatprep.mubr.f32.mxu0 0.0
    %602 = vmatmul.mubr.f32.gmra.mrb[0].mxu0 %v530
    %v603 = vpop.f32.mrb[0].mxu0
    %v604 = vadd.f32 %v525, %v603
    %v605 = vpop.f32.mrb[0].mxu0
    %606 = vdwg.mxu0
    %v607 = vld [vmem:[#allocation5 + $0x38] sm:$0xff]
    %v608 = vld [vmem:[#allocation5 + $0x40] sm:$0xff]
    %vm609 = vcmask 64512
    %v611 = vsel %vm609, %v604, 0
    %613 = vmatprep.subr.mxu0 0.0
    %614 = vmatpush1.msra.mxu0 %v608
    %615 = vmatprep.subr.mxu0 0.0
    %616 = vmatpush1.msra.mxu0 0.0
    %617 = vmatprep.subr.mxu0 0.0
    %618 = vmatpush1.msra.mxu0 0.0
    %619 = vmatprep.subr.mxu0 0.0
    %620 = vmatpush1.msra.mxu0 0.0
    %621 = vmatprep.subr.mxu0 0.0
    %622 = vmatpush1.msra.mxu0 0.0
    %623 = vmatprep.subr.mxu0 0.0
    %624 = vmatpush1.msra.mxu0 0.0
    %625 = vmatprep.subr.mxu0 0.0
    %626 = vmatpush1.msra.mxu0 0.0
    %627 = vmatprep.subr.mxu0 0.0
    %628 = vmatpush1.msra.mxu0 0.0
    %629 = vmatprep.subr.mxu0 0.0
    %630 = vmatpush1.msra.mxu0 0.0
    %631 = vmatprep.subr.mxu0 0.0
    %632 = vmatpush1.msra.mxu0 0.0
    %633 = vmatprep.subr.mxu0 0.0
    %634 = vmatpush1.msra.mxu0 0.0
    %635 = vmatprep.subr.mxu0 0.0
    %636 = vmatpush1.msra.mxu0 0.0
    %637 = vmatprep.subr.mxu0 0.0
    %638 = vmatpush1.msra.mxu0 0.0
    %639 = vmatprep.subr.mxu0 0.0
    %640 = vmatpush1.msra.mxu0 0.0
    %641 = vmatprep.subr.mxu0 0.0
    %642 = vmatpush1.msra.mxu0 0.0
    %643 = vmatprep.subr.mxu0 0.0
    %644 = vmatpush1.msra.mxu0 0.0
    %645 = vmatprep.subr.mxu0 0.0
    %646 = vmatpush1.msra.mxu0 0.0
    %647 = vmatprep.subr.mxu0 0.0
    %648 = vmatpush1.msra.mxu0 0.0
    %649 = vmatprep.subr.mxu0 0.0
    %650 = vmatpush1.msra.mxu0 0.0
    %651 = vmatprep.subr.mxu0 0.0
    %652 = vmatpush1.msra.mxu0 0.0
    %653 = vmatprep.subr.mxu0 0.0
    %654 = vmatpush1.msra.mxu0 0.0
    %655 = vmatprep.subr.mxu0 0.0
    %656 = vmatpush1.msra.mxu0 0.0
    %657 = vmatprep.subr.mxu0 0.0
    %658 = vmatpush1.msra.mxu0 0.0
    %659 = vmatprep.subr.mxu0 0.0
    %660 = vmatpush1.msra.mxu0 0.0
    %661 = vmatprep.subr.mxu0 0.0
    %662 = vmatpush1.msra.mxu0 0.0
    %663 = vmatprep.subr.mxu0 0.0
    %664 = vmatpush1.msra.mxu0 0.0
    %665 = vmatprep.subr.mxu0 0.0
    %666 = vmatpush1.msra.mxu0 0.0
    %667 = vmatprep.subr.mxu0 0.0
    %668 = vmatpush1.msra.mxu0 0.0
    %669 = vmatprep.subr.mxu0 0.0
    %670 = vmatpush1.msra.mxu0 0.0
    %671 = vmatprep.subr.mxu0 0.0
    %672 = vmatpush1.msra.mxu0 0.0
    %673 = vmatprep.subr.mxu0 0.0
    %674 = vmatpush1.msra.mxu0 0.0
    %675 = vmatprep.subr.mxu0 0.0
    %676 = vmatpush1.msra.mxu0 0.0
    %677 = vmatprep.mubr.f32.mxu0 0.0
    %678 = vmatmul.mubr.f32.gmra.mrb[0].mxu0 %v611
    %v679 = vpop.f32.mrb[0].mxu0
    %v680 = vadd.f32 0.0, %v679
    %v681 = vpop.f32.mrb[0].mxu0
    %682 = vdwg.mxu0
    %v684 = vsel %vm609, %v599, 0
    %686 = vmatprep.subr.mxu0 0.0
    %687 = vmatpush1.msra.mxu0 %v607
    %688 = vmatprep.subr.mxu0 0.0
    %689 = vmatpush1.msra.mxu0 0.0
    %690 = vmatprep.subr.mxu0 0.0
    %691 = vmatpush1.msra.mxu0 0.0
    %692 = vmatprep.subr.mxu0 0.0
    %693 = vmatpush1.msra.mxu0 0.0
    %694 = vmatprep.subr.mxu0 0.0
    %695 = vmatpush1.msra.mxu0 0.0
    %696 = vmatprep.subr.mxu0 0.0
    %697 = vmatpush1.msra.mxu0 0.0
    %698 = vmatprep.subr.mxu0 0.0
    %699 = vmatpush1.msra.mxu0 0.0
    %700 = vmatprep.subr.mxu0 0.0
    %701 = vmatpush1.msra.mxu0 0.0
    %702 = vmatprep.subr.mxu0 0.0
    %703 = vmatpush1.msra.mxu0 0.0
    %704 = vmatprep.subr.mxu0 0.0
    %705 = vmatpush1.msra.mxu0 0.0
    %706 = vmatprep.subr.mxu0 0.0
    %707 = vmatpush1.msra.mxu0 0.0
    %708 = vmatprep.subr.mxu0 0.0
    %709 = vmatpush1.msra.mxu0 0.0
    %710 = vmatprep.subr.mxu0 0.0
    %711 = vmatpush1.msra.mxu0 0.0
    %712 = vmatprep.subr.mxu0 0.0
    %713 = vmatpush1.msra.mxu0 0.0
    %714 = vmatprep.subr.mxu0 0.0
    %715 = vmatpush1.msra.mxu0 0.0
    %716 = vmatprep.subr.mxu0 0.0
    %717 = vmatpush1.msra.mxu0 0.0
    %718 = vmatprep.subr.mxu0 0.0
    %719 = vmatpush1.msra.mxu0 0.0
    %720 = vmatprep.subr.mxu0 0.0
    %721 = vmatpush1.msra.mxu0 0.0
    %722 = vmatprep.subr.mxu0 0.0
    %723 = vmatpush1.msra.mxu0 0.0
    %724 = vmatprep.subr.mxu0 0.0
    %725 = vmatpush1.msra.mxu0 0.0
    %726 = vmatprep.subr.mxu0 0.0
    %727 = vmatpush1.msra.mxu0 0.0
    %728 = vmatprep.subr.mxu0 0.0
    %729 = vmatpush1.msra.mxu0 0.0
    %730 = vmatprep.subr.mxu0 0.0
    %731 = vmatpush1.msra.mxu0 0.0
    %732 = vmatprep.subr.mxu0 0.0
    %733 = vmatpush1.msra.mxu0 0.0
    %734 = vmatprep.subr.mxu0 0.0
    %735 = vmatpush1.msra.mxu0 0.0
    %736 = vmatprep.subr.mxu0 0.0
    %737 = vmatpush1.msra.mxu0 0.0
    %738 = vmatprep.subr.mxu0 0.0
    %739 = vmatpush1.msra.mxu0 0.0
    %740 = vmatprep.subr.mxu0 0.0
    %741 = vmatpush1.msra.mxu0 0.0
    %742 = vmatprep.subr.mxu0 0.0
    %743 = vmatpush1.msra.mxu0 0.0
    %744 = vmatprep.subr.mxu0 0.0
    %745 = vmatpush1.msra.mxu0 0.0
    %746 = vmatprep.subr.mxu0 0.0
    %747 = vmatpush1.msra.mxu0 0.0
    %748 = vmatprep.subr.mxu0 0.0
    %749 = vmatpush1.msra.mxu0 0.0
    %750 = vmatprep.mubr.f32.mxu0 0.0
    %751 = vmatmul.mubr.f32.gmra.mrb[0].mxu0 %v684
    %v752 = vpop.f32.mrb[0].mxu0
    %v753 = vadd.f32 %v680, %v752
    %v754 = vpop.f32.mrb[0].mxu0
    %755 = vdwg.mxu0
    %v756 = vld [vmem:[#allocation5 + $0x53] sm:$0x1]
    %v757 = vlaneseq
    %v758 = vshrl.u32 %v757, 7
    %v759 = vsub.s32 0, %v758
    %v760 = vrot.slane %v756, %v759
    %v761 = vadd.f32 %v753, %v760
    %v762 = vmax.f32 %v761, 0.0
    %v763 = vld [vmem:[#allocation5 + $0x48] sm:$0xff]
    %v764 = vld [vmem:[#allocation5 + $0x54] sm:$0x1]
    %v765 = vlaneseq
    %v766 = vshrl.u32 %v765, 7
    %v767 = vsub.s32 0, %v766
    %v768 = vrot.slane %v764, %v767
    %v770 = vsel %vm609, %v762, 0
    %772 = vmatprep.subr.mxu0 0.0
    %773 = vmatpush1.msra.mxu0 %v763
    %774 = vmatprep.subr.mxu0 0.0
    %775 = vmatpush1.msra.mxu0 0.0
    %776 = vmatprep.subr.mxu0 0.0
    %777 = vmatpush1.msra.mxu0 0.0
    %778 = vmatprep.subr.mxu0 0.0
    %779 = vmatpush1.msra.mxu0 0.0
    %780 = vmatprep.subr.mxu0 0.0
    %781 = vmatpush1.msra.mxu0 0.0
    %782 = vmatprep.subr.mxu0 0.0
    %783 = vmatpush1.msra.mxu0 0.0
    %784 = vmatprep.subr.mxu0 0.0
    %785 = vmatpush1.msra.mxu0 0.0
    %786 = vmatprep.subr.mxu0 0.0
    %787 = vmatpush1.msra.mxu0 0.0
    %788 = vmatprep.subr.mxu0 0.0
    %789 = vmatpush1.msra.mxu0 0.0
    %790 = vmatprep.subr.mxu0 0.0
    %791 = vmatpush1.msra.mxu0 0.0
    %792 = vmatprep.subr.mxu0 0.0
    %793 = vmatpush1.msra.mxu0 0.0
    %794 = vmatprep.subr.mxu0 0.0
    %795 = vmatpush1.msra.mxu0 0.0
    %796 = vmatprep.subr.mxu0 0.0
    %797 = vmatpush1.msra.mxu0 0.0
    %798 = vmatprep.subr.mxu0 0.0
    %799 = vmatpush1.msra.mxu0 0.0
    %800 = vmatprep.subr.mxu0 0.0
    %801 = vmatpush1.msra.mxu0 0.0
    %802 = vmatprep.subr.mxu0 0.0
    %803 = vmatpush1.msra.mxu0 0.0
    %804 = vmatprep.subr.mxu0 0.0
    %805 = vmatpush1.msra.mxu0 0.0
    %806 = vmatprep.subr.mxu0 0.0
    %807 = vmatpush1.msra.mxu0 0.0
    %808 = vmatprep.subr.mxu0 0.0
    %809 = vmatpush1.msra.mxu0 0.0
    %810 = vmatprep.subr.mxu0 0.0
    %811 = vmatpush1.msra.mxu0 0.0
    %812 = vmatprep.subr.mxu0 0.0
    %813 = vmatpush1.msra.mxu0 0.0
    %814 = vmatprep.subr.mxu0 0.0
    %815 = vmatpush1.msra.mxu0 0.0
    %816 = vmatprep.subr.mxu0 0.0
    %817 = vmatpush1.msra.mxu0 0.0
    %818 = vmatprep.subr.mxu0 0.0
    %819 = vmatpush1.msra.mxu0 0.0
    %820 = vmatprep.subr.mxu0 0.0
    %821 = vmatpush1.msra.mxu0 0.0
    %822 = vmatprep.subr.mxu0 0.0
    %823 = vmatpush1.msra.mxu0 0.0
    %824 = vmatprep.subr.mxu0 0.0
    %825 = vmatpush1.msra.mxu0 0.0
    %826 = vmatprep.subr.mxu0 0.0
    %827 = vmatpush1.msra.mxu0 0.0
    %828 = vmatprep.subr.mxu0 0.0
    %829 = vmatpush1.msra.mxu0 0.0
    %830 = vmatprep.subr.mxu0 0.0
    %831 = vmatpush1.msra.mxu0 0.0
    %832 = vmatprep.subr.mxu0 0.0
    %833 = vmatpush1.msra.mxu0 0.0
    %834 = vmatprep.subr.mxu0 0.0
    %835 = vmatpush1.msra.mxu0 0.0
    %836 = vmatprep.mubr.f32.mxu0 0.0
    %837 = vmatmul.mubr.f32.gmra.mrb[0].mxu0 %v770
    %v838 = vpop.f32.mrb[0].mxu0
    %v839 = vadd.f32 %v768, %v838
    %v840 = vpop.f32.mrb[0].mxu0
    %841 = vdwg.mxu0
    %842 = vst [vmem:[#allocation7] sm:$0xff] %v839
    // Predicated region
    $region26: #{bgnn_forward.1} parent=1 // pred_check
      _
    $region27: #{bgnn_forward.1} parent=1 // pred_check_branch
      %844 = sbr.rel (0) target = $region29
    $region28: #{bgnn_forward.1} parent=1 // pred_region
      %s846 = ssub.s32 128, 128
      %847 = vsyncadd [#allocation4], %s846
      %s849 = sshll.u32 [#allocation7], 4
      %s850 = int_to_ptr.vmem [resolvable:$true] %s849
      %852 = dma.vmem_to_hbm [thread:$0]  %s850, 128, %s4, [#allocation4]
    $region29: #{bgnn_forward.1} parent=1 // pred_fallthru
      _
    // Predicated region
    $region30: #{bgnn_forward.1} parent=1 // pred_check
      _
    $region31: #{bgnn_forward.1} parent=1 // pred_check_branch
      %854 = sbr.rel (0) target = $region33
    $region32: #{bgnn_forward.1} parent=1 // pred_region
      %855 = dma.done [#allocation4], 128
    $region33: #{bgnn_forward.1} parent=1 // pred_fallthru
      _
    %856 = vsyncpa [#allocation3], 1
    %857 = vsyncpa [#allocation6], 1
    %858 = vsyncpa [#allocation4], 1

</llo_original>
